<compile_context>
chip_gen: v6e
topology: v6e:2x2x1
jax: 0.10.0
libtpu: 0.0.40
codegen_flags: <defaults>
</compile_context>

<pallas_src>
import functools

import jax
import jax.numpy as jnp
from jax.experimental import pallas as pl
from jax.experimental.pallas import tpu as pltpu


def _accuracy_kernel(x_ref, label_ref, out_ref, *, n_rows, block_rows, upcast):
    i = pl.program_id(0)

    x = x_ref[...]                               # (TM, C), native dtype
    if upcast:
        x = x.astype(jnp.float32)                # only on v5e / exotic floats
    labels = label_ref[...]                      # (TM, 1) int32
    tm, c = x.shape

    # argmax over last dim with first-occurrence tie-break (matches torch.max).
    max_val = jnp.max(x, axis=-1, keepdims=True)                     # (TM, 1)
    col_ids = jax.lax.broadcasted_iota(jnp.int32, (tm, c), 1)        # (TM, C)
    is_max = x == max_val
    preds = jnp.min(jnp.where(is_max, col_ids, c), axis=-1, keepdims=True)  # (TM, 1)

    # Mask rows of the (possibly padded) final block so garbage rows never count.
    row_ids = i * block_rows + jax.lax.broadcasted_iota(jnp.int32, (tm, 1), 0)
    valid = row_ids < n_rows

    correct = ((preds == labels) & valid).astype(jnp.float32)        # (TM, 1)
    count = jnp.sum(correct)                                         # scalar

    # Per-block partial count into a fully tile-aligned (8, 128) output block:
    # count in [0, 0], zeros elsewhere. Independent per grid step -> "parallel".
    r = jax.lax.broadcasted_iota(jnp.int32, (8, 128), 0)
    l = jax.lax.broadcasted_iota(jnp.int32, (8, 128), 1)
    out_ref[...] = jnp.where((r == 0) & (l == 0), count, jnp.float32(0.0))


def accuracy(x: jax.Array, label: jax.Array, *, max_block_rows: int | None = None,
             target_tile_bytes: int = 2 << 20) -> jax.Array:
    """x: (N, C) float/int, label: (N,) int  ->  scalar float32 accuracy."""
    n, c = x.shape
    itemsize = jnp.dtype(x.dtype).itemsize

    # --- generation-aware sizing --------------------------------------------
    try:
        vmem_cap = int(pltpu.get_tpu_info().vmem_capacity_bytes)
    except Exception:
        vmem_cap = 64 << 20  # conservative (v7x per-TensorCore)
    try:
        kind = jax.devices()[0].device_kind.lower()
    except Exception:
        kind = ""
    is_v5 = "v5" in kind

    # Sublane multiple for the packed dtype (8 f32/i32, 16 bf16/f16, 32 int8).
    sub_mult = {1: 32, 2: 16, 4: 8}.get(itemsize, 8)
    nbuf = 3 if is_v5 else 2  # deeper pipeline only where VMEM is plentiful

    # Bytes-based row tile: ~target_tile_bytes of x per block.
    tm = (target_tile_bytes // max(c * itemsize, 1)) // sub_mult * sub_mult
    tm = max(sub_mult, min(tm, 4096))
    if max_block_rows is not None:
        tm = min(tm, max(sub_mult, (max_block_rows // sub_mult) * sub_mult))

    # Clamp so nbuf x-tiles + lane-padded int32 label tiles fit the VMEM budget.
    budget = min(vmem_cap // 4, 24 << 20)
    per_row_bytes = nbuf * (c * itemsize) + nbuf * 128 * 4
    tm_cap = max(sub_mult, (budget // per_row_bytes) // sub_mult * sub_mult)
    tm = min(tm, tm_cap)

    if tm >= n:
        tm = n  # single block spanning the full (possibly unaligned) batch dim
    num_blocks = pl.cdiv(n, tm)

    label2d = label.astype(jnp.int32).reshape(n, 1)

    # bf16 compute is native on v6e/v7x VPUs (bit-identical argmax); upcast to
    # f32 only on v5e or for other narrow float dtypes.
    upcast = bool(
        jnp.issubdtype(x.dtype, jnp.floating)
        and x.dtype != jnp.float32
        and (is_v5 or x.dtype != jnp.bfloat16)
    )

    # VMEM plan: pipelined x tiles + lane-padded label tiles + output tile.
    vmem_needed = (nbuf * tm * c * itemsize) + (nbuf * tm * 128 * 4) + (2 * 8 * 128 * 4)
    vmem_limit = int(min(max(vmem_needed + (4 << 20), 16 << 20),
                         max(vmem_cap // 2, 16 << 20)))

    cost = pl.CostEstimate(
        flops=3 * n * c,
        transcendentals=0,
        bytes_accessed=n * c * itemsize + n * 4 + num_blocks * 8 * 128 * 4,
    )

    kernel = functools.partial(_accuracy_kernel, n_rows=n, block_rows=tm, upcast=upcast)

    if nbuf == 3:
        x_spec = pl.BlockSpec((tm, c), lambda i: (i, 0), pipeline_mode=pl.Buffered(3))
    else:
        x_spec = pl.BlockSpec((tm, c), lambda i: (i, 0))

    partial = pl.pallas_call(
        kernel,
        out_shape=jax.ShapeDtypeStruct((num_blocks * 8, 128), jnp.float32),
        grid_spec=pltpu.PrefetchScalarGridSpec(
            num_scalar_prefetch=0,
            grid=(num_blocks,),
            in_specs=[
                x_spec,
                pl.BlockSpec((tm, 1), lambda i: (i, 0)),
            ],
            out_specs=pl.BlockSpec((8, 128), lambda i: (i, 0)),
        ),
        compiler_params=pltpu.CompilerParams(
            dimension_semantics=("parallel",),
            vmem_limit_bytes=vmem_limit,
        ),
        cost_estimate=cost,
    )(x, label2d)

    # Tiny final reduction over num_blocks partial counts, outside the kernel.
    return jnp.sum(partial) / jnp.float32(n)


if __name__ == "__main__":
    key = jax.random.PRNGKey(0)
    k_x, k_lbl, k_x2, k_lbl2 = jax.random.split(key, 4)

    # Small demo shape consistent with the module: (batch, num_classes).
    batch, num_classes = 8, 32
    x = jax.random.normal(k_x, (batch, num_classes), dtype=jnp.float32)
    label = jax.random.randint(k_lbl, (batch,), 0, num_classes, dtype=jnp.int32)

    acc = accuracy(x, label)
    jax.block_until_ready(acc)
    ref = jnp.mean((jnp.argmax(x, axis=-1) == label).astype(jnp.float32))
    assert abs(float(acc) - float(ref)) < 1e-6, (float(acc), float(ref))

    # Second check: multi-block parallel grid, ragged final tile, native bf16.
    n2, c2 = 300, 32
    x2 = jax.random.normal(k_x2, (n2, c2), dtype=jnp.float32).astype(jnp.bfloat16)
    label2 = jax.random.randint(k_lbl2, (n2,), 0, c2, dtype=jnp.int32)

    acc2 = accuracy(x2, label2, max_block_rows=128)
    jax.block_until_ready(acc2)
    ref2 = jnp.mean(
        (jnp.argmax(x2.astype(jnp.float32), axis=-1) == label2).astype(jnp.float32)
    )
    assert abs(float(acc2) - float(ref2)) < 1e-6, (float(acc2), float(ref2))

    print("KERNEL_OK")
</pallas_src>

<mosaic_0001>
module attributes {stable_mosaic.version = 11 : i64} {
  func.func @_accuracy_kernel(%arg0: i32, %arg1: memref<8x32xf32, #tpu.memory_space<vmem>>, %arg2: memref<8x1xi32, #tpu.memory_space<vmem>>, %arg3: memref<8x128xf32, #tpu.memory_space<vmem>>) attributes {dimension_semantics = [#tpu.dimension_semantics<parallel>], iteration_bounds = array<i64: 1>, scalar_prefetch = 0 : i64, scratch_operands = 0 : i64, tpu.core_type = #tpu.core_type<tc>, window_params = [{transform_indices = @transform_0, window_bounds = array<i64: 8, 32>}, {transform_indices = @transform_1, window_bounds = array<i64: 8, 1>}, {transform_indices = @transform_2, window_bounds = array<i64: 8, 128>}]} {
    %c0 = arith.constant 0 : index
    %c0_0 = arith.constant 0 : index
    %0 = vector.load %arg1[%c0, %c0_0] : memref<8x32xf32, #tpu.memory_space<vmem>>, vector<8x32xf32>
    %c0_1 = arith.constant 0 : index
    %c0_2 = arith.constant 0 : index
    %1 = vector.load %arg2[%c0_1, %c0_2] : memref<8x1xi32, #tpu.memory_space<vmem>>, vector<8x1xi32>
    %cst = arith.constant dense<0xFF800000> : vector<8xf32>
    %2 = vector.multi_reduction <maximumf>, %0, %cst [1] : vector<8x32xf32> to vector<8xf32>
    %3 = vector.shape_cast %2 : vector<8xf32> to vector<8x1xf32>
    %4 = tpu.iota {dimensions = array<i32: 1>} : vector<8x32xi32>
    %5 = vector.broadcast %3 : vector<8x1xf32> to vector<8x32xf32>
    %6 = arith.cmpf oeq, %0, %5 : vector<8x32xf32>
    %c32_i32 = arith.constant 32 : i32
    %7 = vector.broadcast %c32_i32 : i32 to vector<8x32xi32>
    %8 = arith.select %6, %4, %7 : vector<8x32xi1>, vector<8x32xi32>
    %cst_3 = arith.constant dense<2147483647> : vector<8xi32>
    %9 = vector.multi_reduction <minsi>, %8, %cst_3 [1] : vector<8x32xi32> to vector<8xi32>
    %10 = vector.shape_cast %9 : vector<8xi32> to vector<8x1xi32>
    %c8_i32 = arith.constant 8 : i32
    %11 = arith.muli %arg0, %c8_i32 : i32
    %12 = tpu.iota {dimensions = array<i32: 0>} : vector<8x1xi32>
    %13 = vector.broadcast %11 : i32 to vector<8x1xi32>
    %14 = arith.addi %13, %12 : vector<8x1xi32>
    %c8_i32_4 = arith.constant 8 : i32
    %15 = vector.broadcast %c8_i32_4 : i32 to vector<8x1xi32>
    %16 = arith.cmpi slt, %14, %15 : vector<8x1xi32>
    %17 = arith.cmpi eq, %10, %1 : vector<8x1xi32>
    %18 = arith.andi %17, %16 : vector<8x1xi1>
    %19 = arith.extui %18 : vector<8x1xi1> to vector<8x1xi32>
    %20 = arith.sitofp %19 : vector<8x1xi32> to vector<8x1xf32>
    %21 = vector.shape_cast %20 : vector<8x1xf32> to vector<1x8x1xf32>
    %cst_5 = arith.constant dense<0.000000e+00> : vector<1xf32>
    %22 = vector.multi_reduction <add>, %21, %cst_5 [1, 2] : vector<1x8x1xf32> to vector<1xf32>
    %23 = vector.shape_cast %22 : vector<1xf32> to vector<1x1x1xf32>
    %24 = vector.extract %23[0, 0, 0] : f32 from vector<1x1x1xf32>
    %25 = tpu.iota {dimensions = array<i32: 0>} : vector<8x128xi32>
    %26 = tpu.iota {dimensions = array<i32: 1>} : vector<8x128xi32>
    %c0_i32 = arith.constant 0 : i32
    %27 = vector.broadcast %c0_i32 : i32 to vector<8x128xi32>
    %28 = arith.cmpi eq, %25, %27 : vector<8x128xi32>
    %c0_i32_6 = arith.constant 0 : i32
    %29 = vector.broadcast %c0_i32_6 : i32 to vector<8x128xi32>
    %30 = arith.cmpi eq, %26, %29 : vector<8x128xi32>
    %31 = arith.andi %28, %30 : vector<8x128xi1>
    %cst_7 = arith.constant 0.000000e+00 : f32
    %32 = vector.broadcast %24 : f32 to vector<8x128xf32>
    %33 = vector.broadcast %cst_7 : f32 to vector<8x128xf32>
    %34 = arith.select %31, %32, %33 : vector<8x128xi1>, vector<8x128xf32>
    %c0_8 = arith.constant 0 : index
    %c0_9 = arith.constant 0 : index
    %35 = vector.load %arg3[%c0_8, %c0_9] : memref<8x128xf32, #tpu.memory_space<vmem>>, vector<8x128xf32>
    tpu.vector_store %arg3[%c0_8, %c0_9], %34 {strides = array<i32>} : memref<8x128xf32, #tpu.memory_space<vmem>>, vector<8x128xf32>,
    return
  }
  func.func @transform_0(%arg0: i32) -> (i32, i32) {
    %c0_i32 = arith.constant 0 : i32
    %c0_i32_0 = arith.constant 0 : i32
    return %arg0, %c0_i32 : i32, i32
  }
  func.func @transform_1(%arg0: i32) -> (i32, i32) {
    %c0_i32 = arith.constant 0 : i32
    %c0_i32_0 = arith.constant 0 : i32
    return %arg0, %c0_i32 : i32, i32
  }
  func.func @transform_2(%arg0: i32) -> (i32, i32) {
    %c0_i32 = arith.constant 0 : i32
    %c0_i32_0 = arith.constant 0 : i32
    return %arg0, %c0_i32 : i32, i32
  }
}

</mosaic_0001>

<llo_original>
// kernel: tpu_custom_call.1
$region0: #{tpu_custom_call.1}
  #allocation0 [shape = 'u32[]', space=smem, size = 0x4, offset = 0x4, fixed_abs, tag = 'smem constant byte address 0x4 - core index']
  #allocation1 [shape = 'u32[144,128]{1,0:T(1,128)}', space=vmem, size = 0x12000, scoped, tag = 'internal scratch']
  %s0 = inlined_call_operand.vmem [shape: f32[8,32], index: 0, kind: input, shape index: {}]
  %s1 = inlined_call_operand.vmem [shape: s32[8,1], index: 1, kind: input, shape index: {}]
  %s2 = inlined_call_operand.hbm [shape: f32[8,128], index: 2, kind: output, shape index: {}]
  %s3 = sld [smem:[#allocation0]]
  $region18: #{tpu_custom_call.1} parent=0
    _
  %s5 = ssub.s32 1, %s3
  %s6 = scalar_select 0, %s5, %s3
  $region1: #{tpu_custom_call.1} parent=0
    #allocation2 [shape = 'u8[4096]{0}', space=vmem, size = 0x1000, scoped, tag = 'output window, operand 0, single buffered']
    #allocation3 [shape = 's32[1]{0}', space=sflag, size = 0x4, scoped, tag = 'scoped memory for tpu_custom_call.1']
    %7 = vsyncpa [#allocation3], 0
    // Predicated region
    $region2: #{tpu_custom_call.1} parent=1 // pred_check
      _
    $region3: #{tpu_custom_call.1} parent=1 // pred_check_branch
      %9 = sbr.rel (0) target = $region5
    $region4: #{tpu_custom_call.1} parent=1 // pred_region
      _
    $region5: #{tpu_custom_call.1} parent=1 // pred_fallthru
      _
    // Predicated region
    $region6: #{tpu_custom_call.1} parent=1 // pred_check
      _
    $region7: #{tpu_custom_call.1} parent=1 // pred_check_branch
      %11 = sbr.rel (0) target = $region9
    $region8: #{tpu_custom_call.1} parent=1 // pred_region
      _
    $region9: #{tpu_custom_call.1} parent=1 // pred_fallthru
      _
    %v12 = vld [vmem:[%s0] sm:$0xff]
    %v13 = vld [vmem:[%s1] sm:$0xff]
    %vm14 = vcmask 261120
    %v15 = vsel %vm14, %v12, -inf
    %16 = vmax.xlane.f32.xlu0 %v15
    %v17 = vpop.xlane.xlu0 %16
    %v18 = vlaneseq
    %v19 = vand.u32 %v18, 127
    %vm20 = vcmp.eq.f32.partialorder %v12, %v17
    %v21 = vsel %vm20, %v19, 32
    %v22 = vsel %vm14, %v21, 2147483647
    %v23 = vand.u32 %v22, 65535
    %v24 = vshra.s32 %v22, 16
    %v25 = vcvt.s32.f32 %v23
    %v26 = vcvt.s32.f32 %v24
    %27 = vmin.xlane.f32.xlu0 %v26
    %v28 = vpop.xlane.xlu0 %27
    %vm29 = vcmp.eq.f32.partialorder %v26, %v28
    %v30 = vsel %vm29, %v25, inf
    %31 = vmin.xlane.f32.xlu0 %v30
    %v32 = vpop.xlane.xlu0 %31
    %v33 = vcvt.f32.s32 %v32
    %v34 = vcvt.f32.s32 %v28
    %v35 = vshll.u32 %v34, 16
    %v36 = vadd.s32 %v35, %v33
    %s37 = smul.u32 0, 8
    %v38 = vlaneseq
    %v39 = vshrl.u32 %v38, 7
    %v40 = vstv %s37
    %v41 = vadd.s32 %v40, %v39
    %vm42 = vcmp.lt.s32.totalorder %v41, 8
    %vm43 = vcmp.eq.s32.totalorder %v36, %v13
    %vm44 = vmand %vm43, %vm42
    %v45 = vsel %vm44, 1, 0
    %v46 = vcvt.s32.f32 %v45
    %vm47 = vcmask 7168
    %v48 = vsel %vm47, %v46, 0.0
    %49 = vadd.xlane.f32.xlu0 %v48
    %v50 = vpop.xlane.xlu0 %49
    %v51 = vrot.slane %v50, 4
    %v52 = vadd.f32 %v50, %v51
    %v53 = vrot.slane %v52, 2
    %v54 = vadd.f32 %v52, %v53
    %v55 = vrot.slane %v54, 1
    %v56 = vadd.f32 %v54, %v55
    %s57 = vtos %v56
    %vm58 = vcmp.eq.s32.totalorder %v39, 0
    %vm59 = vcmp.eq.s32.totalorder %v19, 0
    %vm60 = vmand %vm58, %vm59
    %v61 = vstv %s57
    %v62 = vsel %vm60, %v61, 0.0
    %63 = vst [vmem:[#allocation2] sm:$0xff] %v62
    // Predicated region
    $region10: #{tpu_custom_call.1} parent=1 // pred_check
      _
    $region11: #{tpu_custom_call.1} parent=1 // pred_check_branch
      %65 = sbr.rel (0) target = $region13
    $region12: #{tpu_custom_call.1} parent=1 // pred_region
      %s67 = ssub.s32 128, 128
      %68 = vsyncadd [#allocation3], %s67
      %s70 = sshll.u32 [#allocation2], 4
      %s71 = int_to_ptr.vmem [resolvable:$true] %s70
      %73 = dma.vmem_to_hbm [thread:$0]  %s71, 128, %s2, [#allocation3]
    $region13: #{tpu_custom_call.1} parent=1 // pred_fallthru
      _
    // Predicated region
    $region14: #{tpu_custom_call.1} parent=1 // pred_check
      _
    $region15: #{tpu_custom_call.1} parent=1 // pred_check_branch
      %75 = sbr.rel (0) target = $region17
    $region16: #{tpu_custom_call.1} parent=1 // pred_region
      %76 = dma.done [#allocation3], 128
    $region17: #{tpu_custom_call.1} parent=1 // pred_fallthru
      _
    %77 = vsyncpa [#allocation3], 1

</llo_original>
